<compile_context>
chip_gen: v5e
topology: v5e:2x2
jax: 0.10.0
libtpu: 0.0.40
codegen_flags: <defaults>
</compile_context>

<pallas_src>
import jax
import jax.numpy as jnp
from jax.experimental import pallas as pl
from jax.experimental.pallas import tpu as pltpu


def sac_critic_kernel(obs_ref, act_ref, w1_ref, b1_ref, w2_ref, b2_ref,
                      wm_ref, bm_ref, out_ref):
    """relu(cat(obs,act)@W1 + b1) -> relu(.@W2 + b2) -> VPU dot with wm + bm."""
    # Layer 1: single MXU matmul on the in-kernel concat of the two VMEM
    # tiles (no host-side concat, half the vmatmul pushes of a split matmul).
    x = jnp.concatenate([obs_ref[...], act_ref[...]], axis=-1)   # (tb, obs+act)
    h1 = jnp.dot(x, w1_ref[...], preferred_element_type=jnp.float32)
    h1 = jnp.maximum(h1 + b1_ref[...], 0.0)                      # f32 elementwise

    # Layer 2 (latent output).
    h2 = jnp.dot(h1.astype(w2_ref.dtype), w2_ref[...],
                 preferred_element_type=jnp.float32)
    h2 = jnp.maximum(h2 + b2_ref[...], 0.0)                      # (tb, indim) f32

    # Q head (N=1): VPU multiply + XLU lane-reduce instead of an N=1 MXU
    # matmul (which would fill 1 useful output lane out of 128/256).
    q = jnp.sum(h2 * wm_ref[...], axis=-1, keepdims=True) + bm_ref[...]
    out_ref[...] = q.astype(out_ref.dtype)                       # (tb, 1)


def _round_up(n, m):
    return ((n + m - 1) // m) * m


def sac_critic_forward(obs, act, params, *, block_b=4096,
                       compute_dtype=jnp.bfloat16,
                       core_parallel=False,
                       vmem_budget_bytes=24 << 20):
    """Fused SacCritic forward. Returns q of shape (B,)."""
    w1, b1, w2, b2, wm, bm = params
    B, obs_dim = obs.shape
    act_dim = act.shape[1]
    in_dim, hidden = w1.shape
    indim = w2.shape[1]
    assert in_dim == obs_dim + act_dim

    itemsize = jnp.dtype(compute_dtype).itemsize
    # Sublane tile depends on packing: (8,128) f32, (16,128) bf16, (32,128) 8-bit.
    sub = 8 if itemsize >= 4 else (16 if itemsize == 2 else 32)

    # One-time parameter prep (hoisted by jit when params are constants).
    w1_c = w1.astype(compute_dtype)                    # (in_dim, hidden), MXU dtype
    w2_c = w2.astype(compute_dtype)                    # (hidden, indim), MXU dtype
    b1_f = b1.reshape(1, hidden).astype(jnp.float32)
    b2_f = b2.reshape(1, indim).astype(jnp.float32)
    wm_row = wm.reshape(1, indim).astype(jnp.float32)  # head weight as f32 row (VPU)
    bm_f = bm.reshape(1, 1).astype(jnp.float32)

    obs_c = obs.astype(compute_dtype)
    act_c = act.astype(compute_dtype)

    # Batch tiling: dtype-aware sublane rounding, then cap by VMEM budget.
    tb = _round_up(min(block_b, _round_up(B, sub)), sub)

    def vmem_bytes(t):
        # 2 streamed inputs x 2 buffers, lane-padded to 128 lanes.
        streamed_in = 2 * 2 * t * 128 * itemsize
        # f32 output (tb,1), lane-padded to 128, double-buffered.
        streamed_out = 2 * t * 128 * 4
        # Resident weights/biases (double-buffered, lane/sublane padded; coarse).
        weights = 2 * ((_round_up(in_dim, 8) + _round_up(hidden, 8)) *
                       _round_up(max(hidden, indim), 128) * itemsize
                       + 4 * 8 * 128 * 4)
        return streamed_in + streamed_out + weights

    while tb > sub and vmem_bytes(tb) > vmem_budget_bytes:
        tb = max(sub, _round_up(tb // 2, sub))

    bp = _round_up(B, tb)
    if bp != B:
        obs_c = jnp.pad(obs_c, ((0, bp - B), (0, 0)))
        act_c = jnp.pad(act_c, ((0, bp - B), (0, 0)))

    batch_tile = lambda d: pl.BlockSpec((tb, d), lambda i: (i, 0))
    resident = lambda r, c: pl.BlockSpec((r, c), lambda i: (0, 0))

    # v7x: set core_parallel=True so the batch axis is split across both
    # TensorCores ("parallel" alone does not change codegen).
    batch_sem = pltpu.CORE_PARALLEL if core_parallel else pltpu.PARALLEL

    # Explicit VMEM limit: above v5e's 16 MiB scoped default when needed,
    # never above the v6e/v7x 32 MiB scoped default.
    vmem_limit = int(min(max(2 * vmem_bytes(tb), 16 << 20), 32 << 20))

    q = pl.pallas_call(
        sac_critic_kernel,
        out_shape=jax.ShapeDtypeStruct((bp, 1), jnp.float32),
        grid=(bp // tb,),
        in_specs=[
            batch_tile(obs_dim),            # obs tiles stream through VMEM
            batch_tile(act_dim),            # act tiles stream through VMEM
            resident(in_dim, hidden),       # full W1 (VMEM-resident)
            resident(1, hidden),            # b1
            resident(hidden, indim),        # W2
            resident(1, indim),             # b2
            resident(1, indim),             # wm as a row (f32, VPU head)
            resident(1, 1),                 # bm
        ],
        out_specs=pl.BlockSpec((tb, 1), lambda i: (i, 0)),
        compiler_params=pltpu.CompilerParams(
            dimension_semantics=(batch_sem,),
            vmem_limit_bytes=vmem_limit),
    )(obs_c, act_c, w1_c, b1_f, w2_c, b2_f, wm_row, bm_f)

    return q[:B, 0]                                    # squeeze(-1) -> (B,)


def init_params(key, in_dim, hidden, indim):
    """Deterministic synthetic parameter init (gain=1.0 style scaling)."""
    k1, k2, k3 = jax.random.split(key, 3)
    w1 = jax.random.normal(k1, (in_dim, hidden), jnp.float32) / jnp.sqrt(in_dim)
    b1 = jnp.zeros((1, hidden), jnp.float32)
    w2 = jax.random.normal(k2, (hidden, indim), jnp.float32) / jnp.sqrt(hidden)
    b2 = jnp.zeros((1, indim), jnp.float32)
    wm = jax.random.normal(k3, (indim, 1), jnp.float32) / jnp.sqrt(indim)
    bm = jnp.zeros((1, 1), jnp.float32)
    return (w1, b1, w2, b2, wm, bm)


def reference_forward(obs, act, params):
    w1, b1, w2, b2, wm, bm = params
    x = jnp.concatenate([obs, act], axis=-1)
    h1 = jnp.maximum(x @ w1 + b1, 0.0)
    h2 = jnp.maximum(h1 @ w2 + b2, 0.0)
    return (h2 @ wm + bm)[:, 0]


if __name__ == "__main__":
    # Small shapes consistent with SAC: batch=8, obs_dim=12, act_dim=4,
    # latent hidden=32, indim=32 (matching head input width).
    B, OBS_DIM, ACT_DIM, HIDDEN, INDIM = 8, 12, 4, 32, 32

    key = jax.random.PRNGKey(0)
    k_obs, k_act, k_par = jax.random.split(key, 3)
    obs = jax.random.normal(k_obs, (B, OBS_DIM), jnp.float32)
    act = jax.random.normal(k_act, (B, ACT_DIM), jnp.float32)
    params = init_params(k_par, OBS_DIM + ACT_DIM, HIDDEN, INDIM)

    q_ref = reference_forward(obs, act, params)

    # f32 path: matches the reference to tight tolerance.
    q32 = sac_critic_forward(obs, act, params, compute_dtype=jnp.float32)
    jax.block_until_ready(q32)
    assert q32.shape == (B,), q32.shape
    assert jnp.allclose(q32, q_ref, atol=1e-5, rtol=1e-5)

    # Default path: bf16 streams/weights, f32 accumulate + f32 elementwise.
    qbf = sac_critic_forward(obs, act, params)
    jax.block_until_ready(qbf)
    assert qbf.shape == (B,), qbf.shape
    assert jnp.allclose(qbf, q_ref, atol=1e-1, rtol=1e-1)

    print("KERNEL_OK")
</pallas_src>

<mosaic_0001>
module attributes {stable_mosaic.version = 11 : i64} {
  func.func @sac_critic_kernel(%arg0: i32, %arg1: memref<8x12xf32, #tpu.memory_space<vmem>>, %arg2: memref<8x4xf32, #tpu.memory_space<vmem>>, %arg3: memref<16x32xf32, #tpu.memory_space<vmem>>, %arg4: memref<1x32xf32, #tpu.memory_space<vmem>>, %arg5: memref<32x32xf32, #tpu.memory_space<vmem>>, %arg6: memref<1x32xf32, #tpu.memory_space<vmem>>, %arg7: memref<1x32xf32, #tpu.memory_space<vmem>>, %arg8: memref<1x1xf32, #tpu.memory_space<vmem>>, %arg9: memref<8x1xf32, #tpu.memory_space<vmem>>) attributes {dimension_semantics = [#tpu.dimension_semantics<parallel>], iteration_bounds = array<i64: 1>, scalar_prefetch = 0 : i64, scratch_operands = 0 : i64, tpu.core_type = #tpu.core_type<tc>, window_params = [{transform_indices = @transform_0, window_bounds = array<i64: 8, 12>}, {transform_indices = @transform_1, window_bounds = array<i64: 8, 4>}, {pipeline_mode = #tpu.pipeline_mode<synchronous>, transform_indices = @transform_2, window_bounds = array<i64: 16, 32>}, {pipeline_mode = #tpu.pipeline_mode<synchronous>, transform_indices = @transform_3, window_bounds = array<i64: 1, 32>}, {pipeline_mode = #tpu.pipeline_mode<synchronous>, transform_indices = @transform_4, window_bounds = array<i64: 32, 32>}, {pipeline_mode = #tpu.pipeline_mode<synchronous>, transform_indices = @transform_5, window_bounds = array<i64: 1, 32>}, {pipeline_mode = #tpu.pipeline_mode<synchronous>, transform_indices = @transform_6, window_bounds = array<i64: 1, 32>}, {pipeline_mode = #tpu.pipeline_mode<synchronous>, transform_indices = @transform_7, window_bounds = array<i64: 1, 1>}, {transform_indices = @transform_8, window_bounds = array<i64: 8, 1>}]} {
    %c0 = arith.constant 0 : index
    %c0_0 = arith.constant 0 : index
    %0 = vector.load %arg1[%c0, %c0_0] : memref<8x12xf32, #tpu.memory_space<vmem>>, vector<8x12xf32>
    %c0_1 = arith.constant 0 : index
    %c0_2 = arith.constant 0 : index
    %1 = vector.load %arg2[%c0_1, %c0_2] : memref<8x4xf32, #tpu.memory_space<vmem>>, vector<8x4xf32>
    %2 = tpu.concatenate %0, %1 in 1 : vector<8x12xf32>, vector<8x4xf32> -> vector<8x16xf32>
    %c0_3 = arith.constant 0 : index
    %c0_4 = arith.constant 0 : index
    %3 = vector.load %arg3[%c0_3, %c0_4] : memref<16x32xf32, #tpu.memory_space<vmem>>, vector<16x32xf32>
    %cst = arith.constant dense<0.000000e+00> : vector<8x32xf32>
    %4 = tpu.matmul %2, %3, %cst {dimension_numbers = #tpu.dot_dimension_numbers<[1], [0], [0], [1], [0, 0, 1, 1], [], []>} : vector<8x16xf32>, vector<16x32xf32>, vector<8x32xf32> -> vector<8x32xf32>
    %c0_5 = arith.constant 0 : index
    %c0_6 = arith.constant 0 : index
    %5 = vector.load %arg4[%c0_5, %c0_6] : memref<1x32xf32, #tpu.memory_space<vmem>>, vector<1x32xf32>
    %6 = vector.broadcast %5 : vector<1x32xf32> to vector<8x32xf32>
    %7 = arith.addf %4, %6 : vector<8x32xf32>
    %cst_7 = arith.constant 0.000000e+00 : f32
    %8 = vector.broadcast %cst_7 : f32 to vector<8x32xf32>
    %9 = arith.maximumf %7, %8 : vector<8x32xf32>
    %c0_8 = arith.constant 0 : index
    %c0_9 = arith.constant 0 : index
    %10 = vector.load %arg5[%c0_8, %c0_9] : memref<32x32xf32, #tpu.memory_space<vmem>>, vector<32x32xf32>
    %cst_10 = arith.constant dense<0.000000e+00> : vector<8x32xf32>
    %11 = tpu.matmul %9, %10, %cst_10 {dimension_numbers = #tpu.dot_dimension_numbers<[1], [0], [0], [1], [0, 0, 1, 1], [], []>} : vector<8x32xf32>, vector<32x32xf32>, vector<8x32xf32> -> vector<8x32xf32>
    %c0_11 = arith.constant 0 : index
    %c0_12 = arith.constant 0 : index
    %12 = vector.load %arg6[%c0_11, %c0_12] : memref<1x32xf32, #tpu.memory_space<vmem>>, vector<1x32xf32>
    %13 = vector.broadcast %12 : vector<1x32xf32> to vector<8x32xf32>
    %14 = arith.addf %11, %13 : vector<8x32xf32>
    %cst_13 = arith.constant 0.000000e+00 : f32
    %15 = vector.broadcast %cst_13 : f32 to vector<8x32xf32>
    %16 = arith.maximumf %14, %15 : vector<8x32xf32>
    %c0_14 = arith.constant 0 : index
    %c0_15 = arith.constant 0 : index
    %17 = vector.load %arg7[%c0_14, %c0_15] : memref<1x32xf32, #tpu.memory_space<vmem>>, vector<1x32xf32>
    %18 = vector.broadcast %17 : vector<1x32xf32> to vector<8x32xf32>
    %19 = arith.mulf %16, %18 : vector<8x32xf32>
    %cst_16 = arith.constant dense<0.000000e+00> : vector<8xf32>
    %20 = vector.multi_reduction <add>, %19, %cst_16 [1] : vector<8x32xf32> to vector<8xf32>
    %21 = vector.shape_cast %20 : vector<8xf32> to vector<8x1xf32>
    %c0_17 = arith.constant 0 : index
    %c0_18 = arith.constant 0 : index
    %22 = vector.load %arg8[%c0_17, %c0_18] : memref<1x1xf32, #tpu.memory_space<vmem>>, vector<1x1xf32>
    %23 = vector.broadcast %22 : vector<1x1xf32> to vector<8x1xf32>
    %24 = arith.addf %21, %23 : vector<8x1xf32>
    %c0_19 = arith.constant 0 : index
    %c0_20 = arith.constant 0 : index
    %25 = vector.load %arg9[%c0_19, %c0_20] : memref<8x1xf32, #tpu.memory_space<vmem>>, vector<8x1xf32>
    tpu.vector_store %arg9[%c0_19, %c0_20], %24 {strides = array<i32>} : memref<8x1xf32, #tpu.memory_space<vmem>>, vector<8x1xf32>,
    return
  }
  func.func @transform_0(%arg0: i32) -> (i32, i32) {
    %c0_i32 = arith.constant 0 : i32
    %c0_i32_0 = arith.constant 0 : i32
    return %arg0, %c0_i32 : i32, i32
  }
  func.func @transform_1(%arg0: i32) -> (i32, i32) {
    %c0_i32 = arith.constant 0 : i32
    %c0_i32_0 = arith.constant 0 : i32
    return %arg0, %c0_i32 : i32, i32
  }
  func.func @transform_2(%arg0: i32) -> (i32, i32) {
    %c0_i32 = arith.constant 0 : i32
    %c0_i32_0 = arith.constant 0 : i32
    %c0_i32_1 = arith.constant 0 : i32
    return %c0_i32, %c0_i32_0 : i32, i32
  }
  func.func @transform_3(%arg0: i32) -> (i32, i32) {
    %c0_i32 = arith.constant 0 : i32
    %c0_i32_0 = arith.constant 0 : i32
    %c0_i32_1 = arith.constant 0 : i32
    return %c0_i32, %c0_i32_0 : i32, i32
  }
  func.func @transform_4(%arg0: i32) -> (i32, i32) {
    %c0_i32 = arith.constant 0 : i32
    %c0_i32_0 = arith.constant 0 : i32
    %c0_i32_1 = arith.constant 0 : i32
    return %c0_i32, %c0_i32_0 : i32, i32
  }
  func.func @transform_5(%arg0: i32) -> (i32, i32) {
    %c0_i32 = arith.constant 0 : i32
    %c0_i32_0 = arith.constant 0 : i32
    %c0_i32_1 = arith.constant 0 : i32
    return %c0_i32, %c0_i32_0 : i32, i32
  }
  func.func @transform_6(%arg0: i32) -> (i32, i32) {
    %c0_i32 = arith.constant 0 : i32
    %c0_i32_0 = arith.constant 0 : i32
    %c0_i32_1 = arith.constant 0 : i32
    return %c0_i32, %c0_i32_0 : i32, i32
  }
  func.func @transform_7(%arg0: i32) -> (i32, i32) {
    %c0_i32 = arith.constant 0 : i32
    %c0_i32_0 = arith.constant 0 : i32
    %c0_i32_1 = arith.constant 0 : i32
    return %c0_i32, %c0_i32_0 : i32, i32
  }
  func.func @transform_8(%arg0: i32) -> (i32, i32) {
    %c0_i32 = arith.constant 0 : i32
    %c0_i32_0 = arith.constant 0 : i32
    return %arg0, %c0_i32 : i32, i32
  }
}

</mosaic_0001>

<llo_original>
// kernel: tpu_custom_call.1
$region0: #{tpu_custom_call.1}
  #allocation0 [shape = 'u32[]', space=smem, size = 0x4, offset = 0x4, fixed_abs, tag = 'smem constant byte address 0x4 - core index']
  #allocation1 [shape = 'u32[72,128]{1,0:T(1,128)}', space=vmem, size = 0x9000, scoped, tag = 'internal scratch']
  #allocation2 [shape = 'f32[1,1]{1,0:T(1,128)S(1)}', space=vmem, size = 0x200, scoped, tag = 'scoped memory for tpu_custom_call.1']
  %s0 = inlined_call_operand.vmem [shape: f32[8,12], index: 0, kind: input, shape index: {}]
  %s1 = inlined_call_operand.vmem [shape: f32[8,4], index: 1, kind: input, shape index: {}]
  %s2 = inlined_call_operand.hbm [shape: f32[16,32], index: 2, kind: input, shape index: {}]
  %s3 = inlined_call_operand.vmem [shape: f32[1,32], index: 3, kind: input, shape index: {}]
  %s4 = inlined_call_operand.hbm [shape: f32[32,32], index: 4, kind: input, shape index: {}]
  %s5 = inlined_call_operand.vmem [shape: f32[1,32], index: 5, kind: input, shape index: {}]
  %s6 = inlined_call_operand.vmem [shape: f32[1,32], index: 6, kind: input, shape index: {}]
  %s7 = inlined_call_operand.<no memory space> [shape: f32[1,1], index: 7, kind: input, shape index: {}]
  %s8 = inlined_call_operand.vmem [shape: f32[8,1], index: 8, kind: output, shape index: {}]
  %s9 = sld [smem:[#allocation0]]
  $region50: #{tpu_custom_call.1} parent=0
    _
  %s11 = ssub.s32 1, %s9
  %s12 = scalar_select 0, %s11, %s9
  %v13 = vstv %s7
  %14 = vst [vmem:[#allocation2] sm:$0x1] %v13
  $region1: #{tpu_custom_call.1} parent=0
    #allocation3 [shape = 'u8[8192]{0}', space=vmem, size = 0x2000, scoped, tag = 'input window, operand 2, single buffered']
    #allocation4 [shape = 's32[1]{0}', space=sflag, size = 0x4, scoped, tag = 'scoped memory for tpu_custom_call.1']
    #allocation5 [shape = 'u8[16384]{0}', space=vmem, size = 0x4000, scoped, tag = 'input window, operand 4, single buffered']
    #allocation6 [shape = 's32[1]{0}', space=sflag, size = 0x4, scoped, tag = 'scoped memory for tpu_custom_call.1']
    %15 = vsyncpa [#allocation4], 0
    %16 = vsyncpa [#allocation6], 0
    // Predicated region
    $region2: #{tpu_custom_call.1} parent=1 // pred_check
      _
    $region3: #{tpu_custom_call.1} parent=1 // pred_check_branch
      %18 = sbr.rel (0) target = $region5
    $region4: #{tpu_custom_call.1} parent=1 // pred_region
      _
    $region5: #{tpu_custom_call.1} parent=1 // pred_fallthru
      _
    // Predicated region
    $region6: #{tpu_custom_call.1} parent=1 // pred_check
      _
    $region7: #{tpu_custom_call.1} parent=1 // pred_check_branch
      %20 = sbr.rel (0) target = $region9
    $region8: #{tpu_custom_call.1} parent=1 // pred_region
      _
    $region9: #{tpu_custom_call.1} parent=1 // pred_fallthru
      _
    // Predicated region
    $region10: #{tpu_custom_call.1} parent=1 // pred_check
      _
    $region11: #{tpu_custom_call.1} parent=1 // pred_check_branch
      %22 = sbr.rel (0) target = $region13
    $region12: #{tpu_custom_call.1} parent=1 // pred_region
      %24 = vsyncadd [#allocation4], 0
      %s25 = sshll.u32 %s2, 4
      %s26 = int_to_ptr.hbm [resolvable:$true] %s25
      %s27 = sshll.u32 [#allocation3], 4
      %s28 = int_to_ptr.vmem [resolvable:$true] %s27
      %33 = dma.hbm_to_vmem [thread:$0]  %s26, 256, %s28, [#allocation4], 128, 128, 8
    $region13: #{tpu_custom_call.1} parent=1 // pred_fallthru
      _
    // Predicated region
    $region14: #{tpu_custom_call.1} parent=1 // pred_check
      _
    $region15: #{tpu_custom_call.1} parent=1 // pred_check_branch
      %35 = sbr.rel (0) target = $region17
    $region16: #{tpu_custom_call.1} parent=1 // pred_region
      _
    $region17: #{tpu_custom_call.1} parent=1 // pred_fallthru
      _
    // Predicated region
    $region18: #{tpu_custom_call.1} parent=1 // pred_check
      _
    $region19: #{tpu_custom_call.1} parent=1 // pred_check_branch
      %37 = sbr.rel (0) target = $region21
    $region20: #{tpu_custom_call.1} parent=1 // pred_region
      %39 = vsyncadd [#allocation6], 0
      %s40 = sshll.u32 %s4, 4
      %s41 = int_to_ptr.hbm [resolvable:$true] %s40
      %s42 = sshll.u32 [#allocation5], 4
      %s43 = int_to_ptr.vmem [resolvable:$true] %s42
      %48 = dma.hbm_to_vmem [thread:$0]  %s41, 512, %s43, [#allocation6], 128, 128, 8
    $region21: #{tpu_custom_call.1} parent=1 // pred_fallthru
      _
    // Predicated region
    $region22: #{tpu_custom_call.1} parent=1 // pred_check
      _
    $region23: #{tpu_custom_call.1} parent=1 // pred_check_branch
      %50 = sbr.rel (0) target = $region25
    $region24: #{tpu_custom_call.1} parent=1 // pred_region
      _
    $region25: #{tpu_custom_call.1} parent=1 // pred_fallthru
      _
    // Predicated region
    $region26: #{tpu_custom_call.1} parent=1 // pred_check
      _
    $region27: #{tpu_custom_call.1} parent=1 // pred_check_branch
      %52 = sbr.rel (0) target = $region29
    $region28: #{tpu_custom_call.1} parent=1 // pred_region
      _
    $region29: #{tpu_custom_call.1} parent=1 // pred_fallthru
      _
    // Predicated region
    $region30: #{tpu_custom_call.1} parent=1 // pred_check
      _
    $region31: #{tpu_custom_call.1} parent=1 // pred_check_branch
      %54 = sbr.rel (0) target = $region33
    $region32: #{tpu_custom_call.1} parent=1 // pred_region
      _
    $region33: #{tpu_custom_call.1} parent=1 // pred_fallthru
      _
    // Predicated region
    $region34: #{tpu_custom_call.1} parent=1 // pred_check
      _
    $region35: #{tpu_custom_call.1} parent=1 // pred_check_branch
      %56 = sbr.rel (0) target = $region37
    $region36: #{tpu_custom_call.1} parent=1 // pred_region
      %58 = dma.done [#allocation4], 256
    $region37: #{tpu_custom_call.1} parent=1 // pred_fallthru
      _
    // Predicated region
    $region38: #{tpu_custom_call.1} parent=1 // pred_check
      _
    $region39: #{tpu_custom_call.1} parent=1 // pred_check_branch
      %60 = sbr.rel (0) target = $region41
    $region40: #{tpu_custom_call.1} parent=1 // pred_region
      %62 = dma.done [#allocation6], 512
    $region41: #{tpu_custom_call.1} parent=1 // pred_fallthru
      _
    %v63 = vld [vmem:[%s0] sm:$0xff]
    %v64 = vld [vmem:[%s1] sm:$0xff]
    %66 = vrot.lane.b32.xlu0 %v64, 12
    %v67 = vpop.permute.xlu0 %66
    %vm69 = vcmask 97280
    %v70 = vsel %vm69, %v63, %v67
    %v71 = vld [vmem:[#allocation3] sm:$0xff]
    %v72 = vld [vmem:[#allocation3 + $0x8] sm:$0xff]
    %v73 = vld [vmem:[%s3] sm:$0x1]
    %v75 = vperm.slane %v73, 0
    %vm77 = vcmask 130048
    %v79 = vsel %vm77, %v70, 0
    %81 = vmatpush.msra.mxu0 0.0
    %82 = vmatpush.msra.mxu0 0.0
    %83 = vmatpush.msra.mxu0 0.0
    %84 = vmatpush.msra.mxu0 0.0
    %85 = vmatpush.msra.mxu0 0.0
    %86 = vmatpush.msra.mxu0 0.0
    %87 = vmatpush.msra.mxu0 0.0
    %88 = vmatpush.msra.mxu0 0.0
    %89 = vmatpush.msra.mxu0 0.0
    %90 = vmatpush.msra.mxu0 0.0
    %91 = vmatpush.msra.mxu0 0.0
    %92 = vmatpush.msra.mxu0 0.0
    %93 = vmatpush.msra.mxu0 0.0
    %94 = vmatpush.msra.mxu0 0.0
    %95 = vmatpush.msra.mxu0 %v72
    %96 = vmatpush.msra.mxu0 %v71
    %97 = vmatmul.f32.gmra.mxu0 %v79
    %v98 = vpop.f32.mrf.mxu0
    %v99 = vadd.f32 %v75, %v98
    %100 = vdwg.mxu0
    %v101 = vmax.f32 %v99, 0.0
    %v102 = vld [vmem:[#allocation5] sm:$0xff]
    %v103 = vld [vmem:[#allocation5 + $0x8] sm:$0xff]
    %v104 = vld [vmem:[#allocation5 + $0x10] sm:$0xff]
    %v105 = vld [vmem:[#allocation5 + $0x18] sm:$0xff]
    %v106 = vld [vmem:[%s5] sm:$0x1]
    %v108 = vperm.slane %v106, 0
    %vm110 = vcmask 261120
    %v112 = vsel %vm110, %v101, 0
    %114 = vmatpush.msra.mxu0 0.0
    %115 = vmatpush.msra.mxu0 0.0
    %116 = vmatpush.msra.mxu0 0.0
    %117 = vmatpush.msra.mxu0 0.0
    %118 = vmatpush.msra.mxu0 0.0
    %119 = vmatpush.msra.mxu0 0.0
    %120 = vmatpush.msra.mxu0 0.0
    %121 = vmatpush.msra.mxu0 0.0
    %122 = vmatpush.msra.mxu0 0.0
    %123 = vmatpush.msra.mxu0 0.0
    %124 = vmatpush.msra.mxu0 0.0
    %125 = vmatpush.msra.mxu0 0.0
    %126 = vmatpush.msra.mxu0 %v105
    %127 = vmatpush.msra.mxu0 %v104
    %128 = vmatpush.msra.mxu0 %v103
    %129 = vmatpush.msra.mxu0 %v102
    %130 = vmatmul.f32.gmra.mxu0 %v112
    %v131 = vpop.f32.mrf.mxu0
    %v132 = vadd.f32 %v108, %v131
    %133 = vdwg.mxu0
    %v134 = vmax.f32 %v132, 0.0
    %v135 = vld [vmem:[%s6] sm:$0x1]
    %v137 = vperm.slane %v135, 0
    %v139 = vmul.f32 %v134, %v137
    %v140 = vsel %vm110, %v139, 0.0
    %141 = vadd.xlane.f32.xlu0 %v140
    %v142 = vpop.xlane.xlu0 %141
    %v143 = vld [vmem:[#allocation2] sm:$0x1]
    %v145 = vperm.slane %v143, 0
    %v147 = vadd.f32 %v142, %v145
    %vm148 = vcmask 7168
    %149 = vst.msk [vmem:[%s8] sm:$0xff] %vm148, %v147
    // Predicated region
    $region42: #{tpu_custom_call.1} parent=1 // pred_check
      _
    $region43: #{tpu_custom_call.1} parent=1 // pred_check_branch
      %151 = sbr.rel (0) target = $region45
    $region44: #{tpu_custom_call.1} parent=1 // pred_region
      _
    $region45: #{tpu_custom_call.1} parent=1 // pred_fallthru
      _
    // Predicated region
    $region46: #{tpu_custom_call.1} parent=1 // pred_check
      _
    $region47: #{tpu_custom_call.1} parent=1 // pred_check_branch
      %153 = sbr.rel (0) target = $region49
    $region48: #{tpu_custom_call.1} parent=1 // pred_region
      _
    $region49: #{tpu_custom_call.1} parent=1 // pred_fallthru
      _
    %154 = vsyncpa [#allocation4], 1
    %155 = vsyncpa [#allocation6], 1

</llo_original>
